<compile_context>
chip_gen: v7x
topology: tpu7x:2x2x1
jax: 0.10.0
libtpu: 0.0.40
codegen_flags: <defaults>
</compile_context>

<pallas_src>
import jax
import jax.numpy as jnp
from jax.experimental import pallas as pl
from jax.experimental.pallas import tpu as pltpu


def _round_up(x, m):
    return (x + m - 1) // m * m


# ---------------------------------------------------------------------------
# Stage 1: theta (Linear)  --  XT = X @ W^T + b, run once over row tiles.
# ---------------------------------------------------------------------------
def theta_kernel(x_ref, w_ref, b_ref, xt_ref):
    acc = jnp.dot(x_ref[...], w_ref[...], preferred_element_type=jnp.float32)
    acc = acc + b_ref[...]
    xt_ref[...] = acc.astype(xt_ref.dtype)


# ---------------------------------------------------------------------------
# Stage 2: Y = relu(L @ XT)  --  three variants chosen by VMEM budget.
# ---------------------------------------------------------------------------
def smooth_single_kernel(l_ref, xt_ref, o_ref):
    """Single contraction block: XT fully resident, no accumulator."""
    acc = jnp.dot(l_ref[...], xt_ref[...], preferred_element_type=jnp.float32)
    o_ref[...] = jnp.maximum(acc, 0.0).astype(o_ref.dtype)


def smooth_ktiled_stream_kernel(l_ref, xt_ref, o_ref, acc_ref):
    """K-tiled, XT streamed per k-tile, f32 VMEM accumulator."""
    k = pl.program_id(1)

    @pl.when(k == 0)
    def _():
        acc_ref[...] = jnp.zeros_like(acc_ref)

    acc_ref[...] += jnp.dot(l_ref[...], xt_ref[...],
                            preferred_element_type=jnp.float32)

    @pl.when(k == pl.num_programs(1) - 1)
    def _():
        o_ref[...] = jnp.maximum(acc_ref[...], 0.0).astype(o_ref.dtype)


def make_smooth_ktiled_resident_kernel(tk):
    """K-tiled, XT held fully resident in VMEM (fetched once), f32 accumulator."""
    def kernel(l_ref, xt_ref, o_ref, acc_ref):
        k = pl.program_id(1)

        @pl.when(k == 0)
        def _():
            acc_ref[...] = jnp.zeros_like(acc_ref)

        start = pl.multiple_of(k * tk, 128)
        xt = xt_ref[pl.ds(start, tk), :]
        acc_ref[...] += jnp.dot(l_ref[...], xt,
                                preferred_element_type=jnp.float32)

        @pl.when(k == pl.num_programs(1) - 1)
        def _():
            o_ref[...] = jnp.maximum(acc_ref[...], 0.0).astype(o_ref.dtype)
    return kernel


def hgnn_conv(L, X, weight, bias, *, tm=None, tk=None):
    """Fused HGNNConv forward: relu(L @ (X @ weight.T + bias)).

    weight follows torch.nn.Linear layout: (C_out, C_in).
    L is ideally passed as bf16 (see build_hgnn_laplacian); output is bf16.
    """
    N, C_in = X.shape
    C_out, C_in_w = weight.shape
    assert C_in_w == C_in
    assert L.shape == (N, N)
    assert bias.shape == (C_out,)

    kind = jax.devices()[0].device_kind.lower()
    is_v7 = "v7" in kind
    if tm is None:
        tm = 1024 if is_v7 else 512
    if tk is None:
        tk = 2048 if is_v7 else 1024
    # VMEM budget: well under 64 MiB physical on v7x, 128 MiB on v5e/v6e.
    budget = (44 << 20) if is_v7 else (96 << 20)

    # ---- plan stage-2 tiling / padding -------------------------------------
    OUT_B = 2  # bf16 output
    tm = min(tm, _round_up(N, 8))

    def _tiled_ws(tm_, tk_, resident):
        k_pad = _round_up(N, tk_)
        xt_bytes = 2 * (k_pad if resident else tk_) * C_out * 2
        return (2 * tm_ * tk_ * 2 + xt_bytes + tm_ * C_out * 4
                + 2 * tm_ * C_out * OUT_B)

    K1 = _round_up(N, 128)
    single_ws = 2 * tm * K1 * 2 + 2 * K1 * C_out * 2 + 2 * tm * C_out * OUT_B

    if single_ws <= budget:
        mode, tk_eff, K, ws = "single", K1, K1, single_ws
    else:
        tk_eff = min(tk, _round_up(N, 128))
        while _tiled_ws(tm, tk_eff, False) > budget and tk_eff > 512:
            tk_eff = max(_round_up(tk_eff // 2, 128), 128)
        while _tiled_ws(tm, tk_eff, False) > budget and tm > 256:
            tm = max(_round_up(tm // 2, 8), 8)
        K = _round_up(N, tk_eff)
        mode = "resident" if _tiled_ws(tm, tk_eff, True) <= budget else "stream"
        ws = _tiled_ws(tm, tk_eff, mode == "resident")

    R = _round_up(N, tm)
    vmem_bytes = int(min(max(ws + (4 << 20), 16 << 20), budget))

    # ---- Stage 1: theta, bf16 MXU inputs, f32 accumulation, bf16 XT --------
    tm1 = 512 if K % 512 == 0 else (256 if K % 256 == 0 else 128)

    Xp = X.astype(jnp.bfloat16)
    if K > N:
        Xp = jnp.pad(Xp, ((0, K - N), (0, 0)))          # padded rows -> zero X
    Wt = weight.T.astype(jnp.bfloat16)                   # (C_in, C_out)
    b2 = bias.reshape(1, C_out).astype(jnp.float32)

    xt = pl.pallas_call(
        theta_kernel,
        out_shape=jax.ShapeDtypeStruct((K, C_out), jnp.bfloat16),
        grid_spec=pltpu.PrefetchScalarGridSpec(
            num_scalar_prefetch=0,
            grid=(K // tm1,),
            in_specs=[
                pl.BlockSpec((tm1, C_in), lambda i: (i, 0)),    # X row tile
                pl.BlockSpec((C_in, C_out), lambda i: (0, 0)),  # W^T (full)
                pl.BlockSpec((1, C_out), lambda i: (0, 0)),     # bias
            ],
            out_specs=pl.BlockSpec((tm1, C_out), lambda i: (i, 0)),
        ),
        compiler_params=pltpu.CompilerParams(
            dimension_semantics=("parallel",)),
    )(Xp, Wt, b2)

    # ---- Stage 2: smoothing + ReLU ------------------------------------------
    # L should already be bf16 (build_hgnn_laplacian); only cast if it is not,
    # to avoid a redundant 6 B/elem pass over the N x N matrix.
    Lb = L if L.dtype == jnp.bfloat16 else L.astype(jnp.bfloat16)
    if (R, K) != (N, N):
        # Padded columns of L are zero, so padded XT rows (== bias) contribute 0.
        Lb = jnp.pad(Lb, ((0, R - N), (0, K - N)))

    if mode == "single":
        out = pl.pallas_call(
            smooth_single_kernel,
            out_shape=jax.ShapeDtypeStruct((R, C_out), jnp.bfloat16),
            grid_spec=pltpu.PrefetchScalarGridSpec(
                num_scalar_prefetch=0,
                grid=(R // tm,),
                in_specs=[
                    pl.BlockSpec((tm, K), lambda i: (i, 0)),     # L row slab
                    pl.BlockSpec((K, C_out), lambda i: (0, 0)),  # XT resident
                ],
                out_specs=pl.BlockSpec((tm, C_out), lambda i: (i, 0)),
            ),
            compiler_params=pltpu.CompilerParams(
                dimension_semantics=("parallel",),
                vmem_limit_bytes=vmem_bytes),
        )(Lb, xt)
    else:
        if mode == "resident":
            kernel = make_smooth_ktiled_resident_kernel(tk_eff)
            xt_spec = pl.BlockSpec((K, C_out), lambda i, k: (0, 0))
        else:
            kernel = smooth_ktiled_stream_kernel
            xt_spec = pl.BlockSpec((tk_eff, C_out), lambda i, k: (k, 0))
        out = pl.pallas_call(
            kernel,
            out_shape=jax.ShapeDtypeStruct((R, C_out), jnp.bfloat16),
            grid_spec=pltpu.PrefetchScalarGridSpec(
                num_scalar_prefetch=0,
                grid=(R // tm, K // tk_eff),
                in_specs=[
                    pl.BlockSpec((tm, tk_eff), lambda i, k: (i, k)),  # L tile
                    xt_spec,
                ],
                out_specs=pl.BlockSpec((tm, C_out), lambda i, k: (i, 0)),
                scratch_shapes=[pltpu.VMEM((tm, C_out), jnp.float32)],
            ),
            compiler_params=pltpu.CompilerParams(
                dimension_semantics=("parallel", "arbitrary"),
                vmem_limit_bytes=vmem_bytes),
        )(Lb, xt)

    return out[:N] if R > N else out


def build_hgnn_laplacian(H, edge_w=None, *, dtype=jnp.bfloat16):
    """Dense L_HGNN = Dv^{-1/2} H W_e De^{-1} H^T Dv^{-1/2}  (plain-JAX glue).

    Emitted directly in bf16 so the smoothing kernel reads L without a separate
    f32->bf16 cast pass over the N x N matrix (L traffic dominates the forward).
    """
    N, M = H.shape
    if edge_w is None:
        edge_w = jnp.ones((M,), jnp.float32)
    d_v = H @ edge_w                        # node degrees (weighted)
    d_e = jnp.sum(H, axis=0)                # hyperedge degrees
    inv_sqrt_dv = jnp.where(d_v > 0, 1.0 / jnp.sqrt(d_v), 0.0)
    inv_de = jnp.where(d_e > 0, 1.0 / d_e, 0.0)
    L = (inv_sqrt_dv[:, None] * H) * (edge_w * inv_de)[None, :]
    L = L @ (H.T * inv_sqrt_dv[None, :])
    return L.astype(dtype)


if __name__ == "__main__":
    key = jax.random.PRNGKey(0)
    N, M = 128, 32          # nodes, hyperedges
    C_in, C_out = 64, 128   # in/out channels of theta

    k_h, k_x, k_w, k_b = jax.random.split(key, 4)

    # Random hypergraph incidence matrix; guarantee every node in >= 1 edge.
    H = (jax.random.uniform(k_h, (N, M)) < 0.15).astype(jnp.float32)
    H = H.at[jnp.arange(N), jnp.arange(N) % M].set(1.0)
    L = build_hgnn_laplacian(H)             # bf16 at the source

    # Deterministic parameters; weight in torch nn.Linear layout (C_out, C_in).
    X = jax.random.normal(k_x, (N, C_in), jnp.float32)
    bound = 1.0 / (C_in ** 0.5)
    W = jax.random.uniform(k_w, (C_out, C_in), jnp.float32, -bound, bound)
    b = jax.random.uniform(k_b, (C_out,), jnp.float32, -bound, bound)

    out = hgnn_conv(L, X, W, b)
    out = jax.block_until_ready(out)

    # Pure-JAX reference (bf16 L / bf16 MXU path -> loosened tolerance).
    ref = jnp.maximum(L.astype(jnp.float32) @ (X @ W.T + b[None, :]), 0.0)
    assert out.shape == (N, C_out)
    assert out.dtype == jnp.bfloat16
    assert jnp.allclose(out.astype(jnp.float32), ref, atol=3e-2, rtol=3e-2)

    print("KERNEL_OK")
</pallas_src>

<mosaic_0001>
module attributes {stable_mosaic.version = 11 : i64} {
  func.func @theta_kernel(%arg0: i32, %arg1: memref<128x64xbf16, #tpu.memory_space<vmem>>, %arg2: memref<64x128xbf16, #tpu.memory_space<vmem>>, %arg3: memref<1x128xf32, #tpu.memory_space<vmem>>, %arg4: memref<128x128xbf16, #tpu.memory_space<vmem>>) attributes {dimension_semantics = [#tpu.dimension_semantics<parallel>], iteration_bounds = array<i64: 1>, scalar_prefetch = 0 : i64, scratch_operands = 0 : i64, tpu.core_type = #tpu.core_type<tc>, window_params = [{transform_indices = @transform_0, window_bounds = array<i64: 128, 64>}, {pipeline_mode = #tpu.pipeline_mode<synchronous>, transform_indices = @transform_1, window_bounds = array<i64: 64, 128>}, {pipeline_mode = #tpu.pipeline_mode<synchronous>, transform_indices = @transform_2, window_bounds = array<i64: 1, 128>}, {transform_indices = @transform_3, window_bounds = array<i64: 128, 128>}]} {
    %c0 = arith.constant 0 : index
    %c0_0 = arith.constant 0 : index
    %0 = vector.load %arg1[%c0, %c0_0] : memref<128x64xbf16, #tpu.memory_space<vmem>>, vector<128x64xbf16>
    %c0_1 = arith.constant 0 : index
    %c0_2 = arith.constant 0 : index
    %1 = vector.load %arg2[%c0_1, %c0_2] : memref<64x128xbf16, #tpu.memory_space<vmem>>, vector<64x128xbf16>
    %cst = arith.constant dense<0.000000e+00> : vector<128x128xf32>
    %2 = tpu.matmul %0, %1, %cst {dimension_numbers = #tpu.dot_dimension_numbers<[1], [0], [0], [1], [0, 0, 1, 1], [], []>} : vector<128x64xbf16>, vector<64x128xbf16>, vector<128x128xf32> -> vector<128x128xf32>
    %c0_3 = arith.constant 0 : index
    %c0_4 = arith.constant 0 : index
    %3 = vector.load %arg3[%c0_3, %c0_4] : memref<1x128xf32, #tpu.memory_space<vmem>>, vector<1x128xf32>
    %4 = vector.broadcast %3 : vector<1x128xf32> to vector<128x128xf32>
    %5 = arith.addf %2, %4 : vector<128x128xf32>
    %6 = arith.truncf %5 : vector<128x128xf32> to vector<128x128xbf16>
    %c0_5 = arith.constant 0 : index
    %c0_6 = arith.constant 0 : index
    %7 = vector.load %arg4[%c0_5, %c0_6] : memref<128x128xbf16, #tpu.memory_space<vmem>>, vector<128x128xbf16>
    tpu.vector_store %arg4[%c0_5, %c0_6], %6 {strides = array<i32>} : memref<128x128xbf16, #tpu.memory_space<vmem>>, vector<128x128xbf16>,
    return
  }
  func.func @transform_0(%arg0: i32) -> (i32, i32) {
    %c0_i32 = arith.constant 0 : i32
    %c0_i32_0 = arith.constant 0 : i32
    return %arg0, %c0_i32 : i32, i32
  }
  func.func @transform_1(%arg0: i32) -> (i32, i32) {
    %c0_i32 = arith.constant 0 : i32
    %c0_i32_0 = arith.constant 0 : i32
    %c0_i32_1 = arith.constant 0 : i32
    return %c0_i32, %c0_i32_0 : i32, i32
  }
  func.func @transform_2(%arg0: i32) -> (i32, i32) {
    %c0_i32 = arith.constant 0 : i32
    %c0_i32_0 = arith.constant 0 : i32
    %c0_i32_1 = arith.constant 0 : i32
    return %c0_i32, %c0_i32_0 : i32, i32
  }
  func.func @transform_3(%arg0: i32) -> (i32, i32) {
    %c0_i32 = arith.constant 0 : i32
    %c0_i32_0 = arith.constant 0 : i32
    return %arg0, %c0_i32 : i32, i32
  }
}

</mosaic_0001>

<llo_original>
// kernel: tpu_custom_call.1
$region0: #{tpu_custom_call.1}
  #allocation0 [shape = 'u32[]', space=smem, size = 0x4, offset = 0x4, fixed_abs, tag = 'smem constant byte address 0x4 - core index']
  #allocation1 [shape = 'u32[144,128]{1,0:T(1,128)}', space=vmem, size = 0x12000, scoped, tag = 'internal scratch']
  %s0 = inlined_call_operand.vmem [shape: bf16[128,64], index: 0, kind: input, shape index: {}]
  %s1 = inlined_call_operand.vmem [shape: bf16[64,128], index: 1, kind: input, shape index: {}]
  %s2 = inlined_call_operand.vmem [shape: f32[1,128], index: 2, kind: input, shape index: {}]
  %s3 = inlined_call_operand.hbm [shape: bf16[128,128], index: 3, kind: output, shape index: {}]
  %s4 = sld [smem:[#allocation0]]
  $region22: #{tpu_custom_call.1} parent=0
    _
  %s6 = ssub.s32 1, %s4
  %s7 = scalar_select 0, %s6, %s4
  $region1: #{tpu_custom_call.1} parent=0
    #allocation2 [shape = 'u8[32768]{0}', space=vmem, size = 0x8000, scoped, tag = 'output window, operand 0, single buffered']
    #allocation3 [shape = 's32[1]{0}', space=sflag, size = 0x4, scoped, tag = 'scoped memory for tpu_custom_call.1']
    %8 = vsyncpa [#allocation3], 0
    // Predicated region
    $region2: #{tpu_custom_call.1} parent=1 // pred_check
      _
    $region3: #{tpu_custom_call.1} parent=1 // pred_check_branch
      %10 = sbr.rel (0) target = $region5
    $region4: #{tpu_custom_call.1} parent=1 // pred_region
      _
    $region5: #{tpu_custom_call.1} parent=1 // pred_fallthru
      _
    // Predicated region
    $region6: #{tpu_custom_call.1} parent=1 // pred_check
      _
    $region7: #{tpu_custom_call.1} parent=1 // pred_check_branch
      %12 = sbr.rel (0) target = $region9
    $region8: #{tpu_custom_call.1} parent=1 // pred_region
      _
    $region9: #{tpu_custom_call.1} parent=1 // pred_fallthru
      _
    // Predicated region
    $region10: #{tpu_custom_call.1} parent=1 // pred_check
      _
    $region11: #{tpu_custom_call.1} parent=1 // pred_check_branch
      %14 = sbr.rel (0) target = $region13
    $region12: #{tpu_custom_call.1} parent=1 // pred_region
      _
    $region13: #{tpu_custom_call.1} parent=1 // pred_fallthru
      _
    %v16 = vld [vmem:[%s0] sm:$0xf]
    %v17 = vld [vmem:[%s0 + $0x4] sm:$0xf]
    %v18 = vld [vmem:[%s0 + $0x8] sm:$0xf]
    %v19 = vld [vmem:[%s0 + $0xc] sm:$0xf]
    %v20 = vld [vmem:[%s0 + $0x10] sm:$0xf]
    %v21 = vld [vmem:[%s0 + $0x14] sm:$0xf]
    %v22 = vld [vmem:[%s0 + $0x18] sm:$0xf]
    %v23 = vld [vmem:[%s0 + $0x1c] sm:$0xf]
    %v24 = vld [vmem:[%s0 + $0x20] sm:$0xf]
    %v25 = vld [vmem:[%s0 + $0x24] sm:$0xf]
    %v26 = vld [vmem:[%s0 + $0x28] sm:$0xf]
    %v27 = vld [vmem:[%s0 + $0x2c] sm:$0xf]
    %v28 = vld [vmem:[%s0 + $0x30] sm:$0xf]
    %v29 = vld [vmem:[%s0 + $0x34] sm:$0xf]
    %v30 = vld [vmem:[%s0 + $0x38] sm:$0xf]
    %v31 = vld [vmem:[%s0 + $0x3c] sm:$0xf]
    %v32 = vld [vmem:[%s1] sm:$0xf]
    %v33 = vld [vmem:[%s1 + $0x4] sm:$0xf]
    %v34 = vld [vmem:[%s1 + $0x8] sm:$0xf]
    %v35 = vld [vmem:[%s1 + $0xc] sm:$0xf]
    %v36 = vld [vmem:[%s1 + $0x10] sm:$0xf]
    %v37 = vld [vmem:[%s1 + $0x14] sm:$0xf]
    %v38 = vld [vmem:[%s1 + $0x18] sm:$0xf]
    %v39 = vld [vmem:[%s1 + $0x1c] sm:$0xf]
    %v40 = vld [vmem:[%s2] sm:$0x1]
    %v42 = vlaneseq
    %v43 = vshrl.u32 %v42, 7
    %v44 = vsub.s32 0, %v43
    %v45 = vrot.slane %v40, %v44
    %v63 = vunpack.c.l.b16 %v16
    %v64 = vunpack.c.l.b16 %v17
    %v65 = vunpack.c.l.b16 %v18
    %v66 = vunpack.c.l.b16 %v19
    %v67 = vunpack.c.l.b16 %v20
    %v68 = vunpack.c.l.b16 %v21
    %v69 = vunpack.c.l.b16 %v22
    %v70 = vunpack.c.l.b16 %v23
    %v71 = vunpack.c.l.b16 %v24
    %v72 = vunpack.c.l.b16 %v25
    %v73 = vunpack.c.l.b16 %v26
    %v74 = vunpack.c.l.b16 %v27
    %v75 = vunpack.c.l.b16 %v28
    %v76 = vunpack.c.l.b16 %v29
    %v77 = vunpack.c.l.b16 %v30
    %v78 = vunpack.c.l.b16 %v31
    %v79 = vpack.c.b16 %v64, %v63
    %v80 = vpack.c.b16 %v66, %v65
    %v81 = vpack.c.b16 %v68, %v67
    %v82 = vpack.c.b16 %v70, %v69
    %v83 = vpack.c.b16 %v72, %v71
    %v84 = vpack.c.b16 %v74, %v73
    %v85 = vpack.c.b16 %v76, %v75
    %v86 = vpack.c.b16 %v78, %v77
    %v95 = vunpack.c.l.b16 %v32
    %v96 = vunpack.c.l.b16 %v33
    %v97 = vunpack.c.l.b16 %v34
    %v98 = vunpack.c.l.b16 %v35
    %v99 = vunpack.c.l.b16 %v36
    %v100 = vunpack.c.l.b16 %v37
    %v101 = vunpack.c.l.b16 %v38
    %v102 = vunpack.c.l.b16 %v39
    %v103 = vpack.c.b16 %v96, %v95
    %v104 = vpack.c.b16 %v98, %v97
    %v105 = vpack.c.b16 %v100, %v99
    %v106 = vpack.c.b16 %v102, %v101
    %vm111 = vcmask 523264
    %v113 = vsel %vm111, %v79, 0
    %v116 = vsel %vm111, %v80, 0
    %v119 = vsel %vm111, %v81, 0
    %v122 = vsel %vm111, %v82, 0
    %v125 = vsel %vm111, %v83, 0
    %v128 = vsel %vm111, %v84, 0
    %v131 = vsel %vm111, %v85, 0
    %v134 = vsel %vm111, %v86, 0
    %136 = vmatprep.subr.bf16.mxu0 0
    %137 = vmatpush1.bf16.msra.mxu0 %v103
    %138 = vmatprep.subr.bf16.mxu0 0
    %139 = vmatpush1.bf16.msra.mxu0 %v104
    %140 = vmatprep.subr.bf16.mxu0 0
    %141 = vmatpush1.bf16.msra.mxu0 %v105
    %142 = vmatprep.subr.bf16.mxu0 0
    %143 = vmatpush1.bf16.msra.mxu0 %v106
    %144 = vmatprep.subr.bf16.mxu0 0
    %145 = vmatpush1.bf16.msra.mxu0 0
    %146 = vmatprep.subr.bf16.mxu0 0
    %147 = vmatpush1.bf16.msra.mxu0 0
    %148 = vmatprep.subr.bf16.mxu0 0
    %149 = vmatpush1.bf16.msra.mxu0 0
    %150 = vmatprep.subr.bf16.mxu0 0
    %151 = vmatpush1.bf16.msra.mxu0 0
    %152 = vmatprep.subr.bf16.mxu0 0
    %153 = vmatpush1.bf16.msra.mxu0 0
    %154 = vmatprep.subr.bf16.mxu0 0
    %155 = vmatpush1.bf16.msra.mxu0 0
    %156 = vmatprep.subr.bf16.mxu0 0
    %157 = vmatpush1.bf16.msra.mxu0 0
    %158 = vmatprep.subr.bf16.mxu0 0
    %159 = vmatpush1.bf16.msra.mxu0 0
    %160 = vmatprep.subr.bf16.mxu0 0
    %161 = vmatpush1.bf16.msra.mxu0 0
    %162 = vmatprep.subr.bf16.mxu0 0
    %163 = vmatpush1.bf16.msra.mxu0 0
    %164 = vmatprep.subr.bf16.mxu0 0
    %165 = vmatpush1.bf16.msra.mxu0 0
    %166 = vmatprep.subr.bf16.mxu0 0
    %167 = vmatpush1.bf16.msra.mxu0 0
    %168 = vmatprep.mubr.bf16.mxu0 0
    %169 = vmatmul.mubr.bf16.gmra.mrb[0].mxu0 %v113
    %v170 = vpop.f32.mrb[0].mxu0
    %v171 = vadd.f32 %v45, %v170
    %v172 = vpop.f32.mrb[0].mxu0
    %v173 = vpop.f32.mrb[0].mxu0
    %v174 = vadd.f32 %v45, %v173
    %v175 = vpop.f32.mrb[0].mxu0
    %176 = vmatprep.mubr.bf16.mxu0 0
    %177 = vmatmul.mubr.bf16.gmra.mrb[0].mxu0 %v116
    %v178 = vpop.f32.mrb[0].mxu0
    %v179 = vadd.f32 %v45, %v178
    %v180 = vpop.f32.mrb[0].mxu0
    %v181 = vpop.f32.mrb[0].mxu0
    %v182 = vadd.f32 %v45, %v181
    %v183 = vpop.f32.mrb[0].mxu0
    %184 = vmatprep.mubr.bf16.mxu0 0
    %185 = vmatmul.mubr.bf16.gmra.mrb[0].mxu0 %v119
    %v186 = vpop.f32.mrb[0].mxu0
    %v187 = vadd.f32 %v45, %v186
    %v188 = vpop.f32.mrb[0].mxu0
    %v189 = vpop.f32.mrb[0].mxu0
    %v190 = vadd.f32 %v45, %v189
    %v191 = vpop.f32.mrb[0].mxu0
    %192 = vmatprep.mubr.bf16.mxu0 0
    %193 = vmatmul.mubr.bf16.gmra.mrb[0].mxu0 %v122
    %v194 = vpop.f32.mrb[0].mxu0
    %v195 = vadd.f32 %v45, %v194
    %v196 = vpop.f32.mrb[0].mxu0
    %v197 = vpop.f32.mrb[0].mxu0
    %v198 = vadd.f32 %v45, %v197
    %v199 = vpop.f32.mrb[0].mxu0
    %200 = vmatprep.mubr.bf16.mxu0 0
    %201 = vmatmul.mubr.bf16.gmra.mrb[0].mxu0 %v125
    %v202 = vpop.f32.mrb[0].mxu0
    %v203 = vadd.f32 %v45, %v202
    %v204 = vpop.f32.mrb[0].mxu0
    %v205 = vpop.f32.mrb[0].mxu0
    %v206 = vadd.f32 %v45, %v205
    %v207 = vpop.f32.mrb[0].mxu0
    %208 = vmatprep.mubr.bf16.mxu0 0
    %209 = vmatmul.mubr.bf16.gmra.mrb[0].mxu0 %v128
    %v210 = vpop.f32.mrb[0].mxu0
    %v211 = vadd.f32 %v45, %v210
    %v212 = vpop.f32.mrb[0].mxu0
    %v213 = vpop.f32.mrb[0].mxu0
    %v214 = vadd.f32 %v45, %v213
    %v215 = vpop.f32.mrb[0].mxu0
    %216 = vmatprep.mubr.bf16.mxu0 0
    %217 = vmatmul.mubr.bf16.gmra.mrb[0].mxu0 %v131
    %v218 = vpop.f32.mrb[0].mxu0
    %v219 = vadd.f32 %v45, %v218
    %v220 = vpop.f32.mrb[0].mxu0
    %v221 = vpop.f32.mrb[0].mxu0
    %v222 = vadd.f32 %v45, %v221
    %v223 = vpop.f32.mrb[0].mxu0
    %224 = vmatprep.mubr.bf16.mxu0 0
    %225 = vmatmul.mubr.bf16.gmra.mrb[0].mxu0 %v134
    %v226 = vpop.f32.mrb[0].mxu0
    %v227 = vadd.f32 %v45, %v226
    %v228 = vpop.f32.mrb[0].mxu0
    %v229 = vpop.f32.mrb[0].mxu0
    %v230 = vadd.f32 %v45, %v229
    %v231 = vpop.f32.mrb[0].mxu0
    %232 = vdwg.mxu0
    %v233 = vpack.c.bf16 %v174, %v171
    %v234 = vpack.c.bf16 %v182, %v179
    %v235 = vpack.c.bf16 %v190, %v187
    %v236 = vpack.c.bf16 %v198, %v195
    %v237 = vpack.c.bf16 %v206, %v203
    %v238 = vpack.c.bf16 %v214, %v211
    %v239 = vpack.c.bf16 %v222, %v219
    %v240 = vpack.c.bf16 %v230, %v227
    %v249 = vunpack.c.l.b16 %v233
    %v250 = vunpack.c.h.b16 %v233
    %v251 = vunpack.c.l.b16 %v234
    %v252 = vunpack.c.h.b16 %v234
    %v253 = vunpack.c.l.b16 %v235
    %v254 = vunpack.c.h.b16 %v235
    %v255 = vunpack.c.l.b16 %v236
    %v256 = vunpack.c.h.b16 %v236
    %v257 = vunpack.c.l.b16 %v237
    %v258 = vunpack.c.h.b16 %v237
    %v259 = vunpack.c.l.b16 %v238
    %v260 = vunpack.c.h.b16 %v238
    %v261 = vunpack.c.l.b16 %v239
    %v262 = vunpack.c.h.b16 %v239
    %v263 = vunpack.c.l.b16 %v240
    %v264 = vunpack.c.h.b16 %v240
    %v265 = vpack.c.b16 %v249, %v249
    %v266 = vpack.c.b16 %v250, %v250
    %v267 = vpack.c.b16 %v251, %v251
    %v268 = vpack.c.b16 %v252, %v252
    %v269 = vpack.c.b16 %v253, %v253
    %v270 = vpack.c.b16 %v254, %v254
    %v271 = vpack.c.b16 %v255, %v255
    %v272 = vpack.c.b16 %v256, %v256
    %v273 = vpack.c.b16 %v257, %v257
    %v274 = vpack.c.b16 %v258, %v258
    %v275 = vpack.c.b16 %v259, %v259
    %v276 = vpack.c.b16 %v260, %v260
    %v277 = vpack.c.b16 %v261, %v261
    %v278 = vpack.c.b16 %v262, %v262
    %v279 = vpack.c.b16 %v263, %v263
    %v280 = vpack.c.b16 %v264, %v264
    %297 = vst [vmem:[#allocation2] sm:$0xf] %v265
    %298 = vst [vmem:[#allocation2 + $0x4] sm:$0xf] %v266
    %299 = vst [vmem:[#allocation2 + $0x8] sm:$0xf] %v267
    %300 = vst [vmem:[#allocation2 + $0xc] sm:$0xf] %v268
    %301 = vst [vmem:[#allocation2 + $0x10] sm:$0xf] %v269
    %302 = vst [vmem:[#allocation2 + $0x14] sm:$0xf] %v270
    %303 = vst [vmem:[#allocation2 + $0x18] sm:$0xf] %v271
    %304 = vst [vmem:[#allocation2 + $0x1c] sm:$0xf] %v272
    %305 = vst [vmem:[#allocation2 + $0x20] sm:$0xf] %v273
    %306 = vst [vmem:[#allocation2 + $0x24] sm:$0xf] %v274
    %307 = vst [vmem:[#allocation2 + $0x28] sm:$0xf] %v275
    %308 = vst [vmem:[#allocation2 + $0x2c] sm:$0xf] %v276
    %309 = vst [vmem:[#allocation2 + $0x30] sm:$0xf] %v277
    %310 = vst [vmem:[#allocation2 + $0x34] sm:$0xf] %v278
    %311 = vst [vmem:[#allocation2 + $0x38] sm:$0xf] %v279
    %312 = vst [vmem:[#allocation2 + $0x3c] sm:$0xf] %v280
    // Predicated region
    $region14: #{tpu_custom_call.1} parent=1 // pred_check
      _
    $region15: #{tpu_custom_call.1} parent=1 // pred_check_branch
      %314 = sbr.rel (0) target = $region17
    $region16: #{tpu_custom_call.1} parent=1 // pred_region
      %s316 = ssub.s32 1024, 1024
      %317 = vsyncadd [#allocation3], %s316
      %s318 = sshll.u32 [#allocation2], 4
      %s319 = int_to_ptr.vmem [resolvable:$true] %s318
      %324 = dma.vmem_to_hbm [thread:$0]  %s319, 1024, %s3, [#allocation3], 64, 64, 4
    $region17: #{tpu_custom_call.1} parent=1 // pred_fallthru
      _
    // Predicated region
    $region18: #{tpu_custom_call.1} parent=1 // pred_check
      _
    $region19: #{tpu_custom_call.1} parent=1 // pred_check_branch
      %326 = sbr.rel (0) target = $region21
    $region20: #{tpu_custom_call.1} parent=1 // pred_region
      %327 = dma.done [#allocation3], 1024
    $region21: #{tpu_custom_call.1} parent=1 // pred_fallthru
      _
    %328 = vsyncpa [#allocation3], 1

</llo_original>
